<compile_context>
chip_gen: v7x
topology: tpu7x:2x2x1
jax: 0.10.0
libtpu: 0.0.40
codegen_flags: <defaults>
</compile_context>

<pallas_src>
import functools

import jax
import jax.numpy as jnp
from jax.experimental import pallas as pl
from jax.experimental.pallas import tpu as pltpu


HP = 128  # per-gate lane-padded hidden width (gate g lives at lanes [g*HP, g*HP+H))


# ----------------------------- MLP backbone (client 0) -----------------------------

def _mlp_kernel(x_ref, w1_ref, b1_ref, w2_ref, b2_ref, o_ref):
    x = x_ref[...].astype(jnp.float32)
    h = jnp.dot(x, w1_ref[...], preferred_element_type=jnp.float32) + b1_ref[...]
    h = jnp.maximum(h, 0.0)                                   # ReLU
    y = jnp.dot(h, w2_ref[...], preferred_element_type=jnp.float32) + b2_ref[...]
    o_ref[...] = y.astype(o_ref.dtype)


def mlp_forward(x, params, block_b=256):
    """x: (B, in_dim) -> (B, out_dim). Batch-tiled 'parallel' grid (megacore on v7x)."""
    w1_t, b1, w2_t, b2 = params
    B, in_dim = x.shape
    hid = w1_t.shape[1]
    out_dim = w2_t.shape[1]
    bm = B if B <= block_b else block_b         # block_b is a multiple of 8
    grid = (pl.cdiv(B, bm),)
    return pl.pallas_call(
        _mlp_kernel,
        out_shape=jax.ShapeDtypeStruct((B, out_dim), x.dtype),
        grid=grid,
        in_specs=[
            pl.BlockSpec((bm, in_dim), lambda i: (i, 0)),
            pl.BlockSpec((in_dim, hid), lambda i: (0, 0)),
            pl.BlockSpec((1, hid), lambda i: (0, 0)),
            pl.BlockSpec((hid, out_dim), lambda i: (0, 0)),
            pl.BlockSpec((1, out_dim), lambda i: (0, 0)),
        ],
        out_specs=pl.BlockSpec((bm, out_dim), lambda i: (i, 0)),
        compiler_params=pltpu.CompilerParams(dimension_semantics=("parallel",)),
    )(x, w1_t, b1, w2_t, b2)


# ----------------------------- GRU backbone (clients 1, 2) --------------------------

def _gru_kernel(x_ref, wih_ref, whh_ref, bx_ref, bhn_ref, o_ref, *, seq_len, batch, hp):
    """One grid step == one full independent GRU over the whole sequence (time-major).

    x_ref:   (T*B, I)       time-major flattened input (row t*B + b == time t, batch b)
    wih_ref: (I, 3*hp)      fused, lane-padded input->hidden weights  (gate order r, z, n)
    whh_ref: (hp, 3*hp)     fused, lane-padded hidden->hidden weights
    bx_ref:  (1, 3*hp)      b_ih (all gates) + b_hh (r, z gates only), lane-padded
    bhn_ref: (1, hp)        b_hh for the n gate (must stay inside r*(...)), lane-padded
    o_ref:   (T, B, hp)     time-major, lane-padded output (wrapper slices [:H])
    """
    T, B = seq_len, batch

    x = x_ref[...].astype(jnp.float32)                              # (T*B, I)

    # Hoisted input projection: ONE fused matmul + ONE bias add for all gates / all steps.
    gx = jnp.dot(x, wih_ref[...], preferred_element_type=jnp.float32) + bx_ref[...]

    whh = whh_ref[...].astype(jnp.float32)                          # (hp, 3*hp)
    bhn = jnp.broadcast_to(bhn_ref[...].astype(jnp.float32), (B, hp))  # hoisted broadcast

    h = jnp.zeros((B, hp), jnp.float32)                             # PyTorch default h0 = 0

    # Fully unrolled recurrence (T is small for PTB-XL local models).
    # Single fused MXU matmul per step; all gate slices are static and 128-lane aligned.
    for t in range(T):
        gh = jnp.dot(h, whh, preferred_element_type=jnp.float32)    # (B, 3*hp)
        gx_t = gx[t * B:(t + 1) * B, :]                             # contiguous static view
        r = jax.nn.sigmoid(gx_t[:, 0:hp] + gh[:, 0:hp])
        z = jax.nn.sigmoid(gx_t[:, hp:2 * hp] + gh[:, hp:2 * hp])
        n = jnp.tanh(gx_t[:, 2 * hp:3 * hp] + r * (gh[:, 2 * hp:3 * hp] + bhn))
        h = (1.0 - z) * n + z * h
        o_ref[t] = h.astype(o_ref.dtype)      # full-lane, contiguous (time-major) store


def _gru_stacked_forward(x2d_s, wih_s, whh_s, bx_s, bhn_s, *, seq_len, batch):
    """Run C independent same-shape GRUs in one pallas_call.

    x2d_s: (C, T*B, I) time-major flattened inputs; weights carry the same client axis C.
    The client axis is a "parallel" grid axis -> megacore sharding on v7x.
    Returns (C, T, B, hp) time-major, lane-padded.
    """
    C, TB, I = x2d_s.shape
    hp = whh_s.shape[1]
    kernel = functools.partial(_gru_kernel, seq_len=seq_len, batch=batch, hp=hp)
    return pl.pallas_call(
        kernel,
        out_shape=jax.ShapeDtypeStruct((C, seq_len, batch, hp), x2d_s.dtype),
        grid=(C,),
        in_specs=[
            pl.BlockSpec((None, TB, I), lambda c: (c, 0, 0)),
            pl.BlockSpec((None, I, 3 * hp), lambda c: (c, 0, 0)),
            pl.BlockSpec((None, hp, 3 * hp), lambda c: (c, 0, 0)),
            pl.BlockSpec((None, 1, 3 * hp), lambda c: (c, 0, 0)),
            pl.BlockSpec((None, 1, hp), lambda c: (c, 0, 0)),
        ],
        out_specs=pl.BlockSpec((None, seq_len, batch, hp), lambda c: (c, 0, 0, 0)),
        compiler_params=pltpu.CompilerParams(dimension_semantics=("parallel",)),
    )(x2d_s, wih_s, whh_s, bx_s, bhn_s)


def gru_forward_stacked(x_s, packed_s, hidden):
    """x_s: (C, B, T, I) batch_first stacked inputs; packed_s: pre-stacked packed weights.
    Returns (C, B, T, hidden)."""
    C, B, T, I = x_s.shape
    # Tiny wrapper-side layout plumbing: batch_first -> time-major flattened.
    x2d = jnp.transpose(x_s, (0, 2, 1, 3)).reshape(C, T * B, I)
    out = _gru_stacked_forward(x2d, *packed_s, seq_len=T, batch=B)   # (C, T, B, hp)
    return jnp.transpose(out[..., :hidden], (0, 2, 1, 3))            # (C, B, T, H)


def gru_forward(x, params, hidden):
    """Single-client GRU, batch_first: x (B, T, I) -> (B, T, hidden)."""
    packed = tuple(p[None] for p in params["packed"])
    return gru_forward_stacked(x[None], packed, hidden)[0]


def stack_gru_packed(params_a, params_b):
    """Stack two clients' packed weights ONCE (hoisted out of the per-call path)."""
    return tuple(jnp.stack([a, b], axis=0)
                 for a, b in zip(params_a["packed"], params_b["packed"]))


# ----------------------------- parameter construction -------------------------------

def init_mlp_params(key, in_dim=4, hid=10, out_dim=10, scale=0.1):
    k1, k2, k3, k4 = jax.random.split(key, 4)
    w1_t = scale * jax.random.normal(k1, (in_dim, hid), jnp.float32)     # = W1.T
    b1 = scale * jax.random.normal(k2, (1, hid), jnp.float32)
    w2_t = scale * jax.random.normal(k3, (hid, out_dim), jnp.float32)    # = W2.T
    b2 = scale * jax.random.normal(k4, (1, out_dim), jnp.float32)
    return (w1_t, b1, w2_t, b2)


def init_gru_params(key, in_dim=6, hidden=15, scale=0.1, hp=HP):
    """Returns {'packed': fused lane-padded kernel weights, 'raw': per-gate reference weights}.

    Gate order (r, z, n) as in PyTorch nn.GRU. Packed layout:
      wih_pad[:, g*hp : g*hp+H] = W_ih[g].T        (I, 3*hp)
      whh_pad[:H, g*hp : g*hp+H] = W_hh[g].T       (hp, 3*hp)   rows >= H are zero
      bx[0, g*hp : g*hp+H] = b_ih[g] (+ b_hh[g] for g in {r, z})
      bhn[0, :H] = b_hh[n]
    Padded lanes/rows are exactly zero, so padded lanes of h stay 0 through the recurrence.
    """
    # TODO(synk): PyTorch's default init is uniform(-1/sqrt(H), 1/sqrt(H)); scaled normal is
    # used here (irrelevant to kernel correctness, only to weight-porting parity).
    k1, k2, k3, k4 = jax.random.split(key, 4)
    w_ih = scale * jax.random.normal(k1, (3, in_dim, hidden), jnp.float32)
    w_hh = scale * jax.random.normal(k2, (3, hidden, hidden), jnp.float32)
    b_ih = scale * jax.random.normal(k3, (3, hidden), jnp.float32)
    b_hh = scale * jax.random.normal(k4, (3, hidden), jnp.float32)

    wih_pad = jnp.zeros((in_dim, 3 * hp), jnp.float32)
    whh_pad = jnp.zeros((hp, 3 * hp), jnp.float32)
    bx = jnp.zeros((1, 3 * hp), jnp.float32)
    bhn = jnp.zeros((1, hp), jnp.float32)
    for g in range(3):
        lo = g * hp
        wih_pad = wih_pad.at[:, lo:lo + hidden].set(w_ih[g])
        whh_pad = whh_pad.at[:hidden, lo:lo + hidden].set(w_hh[g])
        bias_g = b_ih[g] + (b_hh[g] if g < 2 else 0.0)
        bx = bx.at[0, lo:lo + hidden].set(bias_g)
    bhn = bhn.at[0, :hidden].set(b_hh[2])

    return {"packed": (wih_pad, whh_pad, bx, bhn), "raw": (w_ih, w_hh, b_ih, b_hh)}


class LocalModelForPTBXL:
    """JAX/Pallas equivalent of the PyTorch LocalModelForPTBXL."""

    MLP_IN, MLP_HID, MLP_OUT = 4, 10, 10
    GRU_IN, GRU_HID = 6, 15

    def __init__(self, client_number, key):
        self.client_number = client_number
        if client_number == 0:
            self.params = init_mlp_params(key, self.MLP_IN, self.MLP_HID, self.MLP_OUT)
        elif client_number in (1, 2):
            self.params = init_gru_params(key, self.GRU_IN, self.GRU_HID)
        else:
            raise ValueError("client_number must be 0, 1 or 2")

    def __call__(self, x):
        if self.client_number == 0:
            return mlp_forward(x, self.params)
        return gru_forward(x, self.params, self.GRU_HID)


# ----------------------------- pure-JAX references (for checking) -------------------

def _mlp_ref(x, params):
    w1_t, b1, w2_t, b2 = params
    h = jnp.maximum(x @ w1_t + b1, 0.0)
    return h @ w2_t + b2


def _gru_ref(x, raw, hidden):
    w_ih, w_hh, b_ih, b_hh = raw                 # (3,I,H), (3,H,H), (3,H), (3,H)
    B = x.shape[0]

    def step(h, x_t):
        r = jax.nn.sigmoid(x_t @ w_ih[0] + b_ih[0] + h @ w_hh[0] + b_hh[0])
        z = jax.nn.sigmoid(x_t @ w_ih[1] + b_ih[1] + h @ w_hh[1] + b_hh[1])
        n = jnp.tanh(x_t @ w_ih[2] + b_ih[2] + r * (h @ w_hh[2] + b_hh[2]))
        h_new = (1.0 - z) * n + z * h
        return h_new, h_new

    h0 = jnp.zeros((B, hidden), jnp.float32)
    _, outs = jax.lax.scan(step, h0, jnp.transpose(x, (1, 0, 2)))
    return jnp.transpose(outs, (1, 0, 2))


# ----------------------------- main --------------------------------------------------

if __name__ == "__main__":
    key = jax.random.PRNGKey(0)
    k_x_mlp, k_x_gru, k_p0, k_p1, k_p2 = jax.random.split(key, 5)

    # client 0: MLP expects (B, 4)
    x_mlp = jax.random.normal(k_x_mlp, (2, 4), jnp.float32)
    # clients 1/2: GRU expects batch_first (B, T, 6)
    x_gru = jax.random.normal(k_x_gru, (2, 8, 6), jnp.float32)

    model0 = LocalModelForPTBXL(0, k_p0)
    model1 = LocalModelForPTBXL(1, k_p1)
    model2 = LocalModelForPTBXL(2, k_p2)

    y0 = jax.block_until_ready(model0(x_mlp))
    y1 = jax.block_until_ready(model1(x_gru))
    y2 = jax.block_until_ready(model2(x_gru))

    assert y0.shape == (2, 10)
    assert y1.shape == (2, 8, 15)
    assert y2.shape == (2, 8, 15)

    # numerical check against pure-JAX references
    assert jnp.allclose(y0, _mlp_ref(x_mlp, model0.params), atol=2e-5)
    assert jnp.allclose(y1, _gru_ref(x_gru, model1.params["raw"], 15), atol=2e-5)
    assert jnp.allclose(y2, _gru_ref(x_gru, model2.params["raw"], 15), atol=2e-5)

    # fused dual-client path: weights stacked ONCE, both GRUs in one pallas_call
    # (the 'parallel' client axis shards across both TensorCores on v7x).
    stacked_params = stack_gru_packed(model1.params, model2.params)
    x_stacked = jnp.stack([x_gru, x_gru], axis=0)
    y_pair = jax.block_until_ready(gru_forward_stacked(x_stacked, stacked_params, 15))
    assert jnp.allclose(y_pair[0], y1, atol=2e-5)
    assert jnp.allclose(y_pair[1], y2, atol=2e-5)

    print("KERNEL_OK")
</pallas_src>

<mosaic_0001>
module attributes {stable_mosaic.version = 11 : i64} {
  func.func @_mlp_kernel(%arg0: i32, %arg1: memref<2x4xf32, #tpu.memory_space<vmem>>, %arg2: memref<4x10xf32, #tpu.memory_space<vmem>>, %arg3: memref<1x10xf32, #tpu.memory_space<vmem>>, %arg4: memref<10x10xf32, #tpu.memory_space<vmem>>, %arg5: memref<1x10xf32, #tpu.memory_space<vmem>>, %arg6: memref<2x10xf32, #tpu.memory_space<vmem>>) attributes {dimension_semantics = [#tpu.dimension_semantics<parallel>], iteration_bounds = array<i64: 1>, scalar_prefetch = 0 : i64, scratch_operands = 0 : i64, tpu.core_type = #tpu.core_type<tc>, window_params = [{transform_indices = @transform_0, window_bounds = array<i64: 2, 4>}, {pipeline_mode = #tpu.pipeline_mode<synchronous>, transform_indices = @transform_1, window_bounds = array<i64: 4, 10>}, {pipeline_mode = #tpu.pipeline_mode<synchronous>, transform_indices = @transform_2, window_bounds = array<i64: 1, 10>}, {pipeline_mode = #tpu.pipeline_mode<synchronous>, transform_indices = @transform_3, window_bounds = array<i64: 10, 10>}, {pipeline_mode = #tpu.pipeline_mode<synchronous>, transform_indices = @transform_4, window_bounds = array<i64: 1, 10>}, {transform_indices = @transform_5, window_bounds = array<i64: 2, 10>}]} {
    %c0 = arith.constant 0 : index
    %c0_0 = arith.constant 0 : index
    %0 = vector.load %arg1[%c0, %c0_0] : memref<2x4xf32, #tpu.memory_space<vmem>>, vector<2x4xf32>
    %c0_1 = arith.constant 0 : index
    %c0_2 = arith.constant 0 : index
    %1 = vector.load %arg2[%c0_1, %c0_2] : memref<4x10xf32, #tpu.memory_space<vmem>>, vector<4x10xf32>
    %cst = arith.constant dense<0.000000e+00> : vector<2x10xf32>
    %2 = tpu.matmul %0, %1, %cst {dimension_numbers = #tpu.dot_dimension_numbers<[1], [0], [0], [1], [0, 0, 1, 1], [], []>} : vector<2x4xf32>, vector<4x10xf32>, vector<2x10xf32> -> vector<2x10xf32>
    %c0_3 = arith.constant 0 : index
    %c0_4 = arith.constant 0 : index
    %3 = vector.load %arg3[%c0_3, %c0_4] : memref<1x10xf32, #tpu.memory_space<vmem>>, vector<1x10xf32>
    %4 = vector.broadcast %3 : vector<1x10xf32> to vector<2x10xf32>
    %5 = arith.addf %2, %4 : vector<2x10xf32>
    %cst_5 = arith.constant 0.000000e+00 : f32
    %6 = vector.broadcast %cst_5 : f32 to vector<2x10xf32>
    %7 = arith.maximumf %5, %6 : vector<2x10xf32>
    %c0_6 = arith.constant 0 : index
    %c0_7 = arith.constant 0 : index
    %8 = vector.load %arg4[%c0_6, %c0_7] : memref<10x10xf32, #tpu.memory_space<vmem>>, vector<10x10xf32>
    %cst_8 = arith.constant dense<0.000000e+00> : vector<2x10xf32>
    %9 = tpu.matmul %7, %8, %cst_8 {dimension_numbers = #tpu.dot_dimension_numbers<[1], [0], [0], [1], [0, 0, 1, 1], [], []>} : vector<2x10xf32>, vector<10x10xf32>, vector<2x10xf32> -> vector<2x10xf32>
    %c0_9 = arith.constant 0 : index
    %c0_10 = arith.constant 0 : index
    %10 = vector.load %arg5[%c0_9, %c0_10] : memref<1x10xf32, #tpu.memory_space<vmem>>, vector<1x10xf32>
    %11 = vector.broadcast %10 : vector<1x10xf32> to vector<2x10xf32>
    %12 = arith.addf %9, %11 : vector<2x10xf32>
    %c0_11 = arith.constant 0 : index
    %c0_12 = arith.constant 0 : index
    %13 = vector.load %arg6[%c0_11, %c0_12] : memref<2x10xf32, #tpu.memory_space<vmem>>, vector<2x10xf32>
    tpu.vector_store %arg6[%c0_11, %c0_12], %12 {strides = array<i32>} : memref<2x10xf32, #tpu.memory_space<vmem>>, vector<2x10xf32>,
    return
  }
  func.func @transform_0(%arg0: i32) -> (i32, i32) {
    %c0_i32 = arith.constant 0 : i32
    %c0_i32_0 = arith.constant 0 : i32
    return %arg0, %c0_i32 : i32, i32
  }
  func.func @transform_1(%arg0: i32) -> (i32, i32) {
    %c0_i32 = arith.constant 0 : i32
    %c0_i32_0 = arith.constant 0 : i32
    %c0_i32_1 = arith.constant 0 : i32
    return %c0_i32, %c0_i32_0 : i32, i32
  }
  func.func @transform_2(%arg0: i32) -> (i32, i32) {
    %c0_i32 = arith.constant 0 : i32
    %c0_i32_0 = arith.constant 0 : i32
    %c0_i32_1 = arith.constant 0 : i32
    return %c0_i32, %c0_i32_0 : i32, i32
  }
  func.func @transform_3(%arg0: i32) -> (i32, i32) {
    %c0_i32 = arith.constant 0 : i32
    %c0_i32_0 = arith.constant 0 : i32
    %c0_i32_1 = arith.constant 0 : i32
    return %c0_i32, %c0_i32_0 : i32, i32
  }
  func.func @transform_4(%arg0: i32) -> (i32, i32) {
    %c0_i32 = arith.constant 0 : i32
    %c0_i32_0 = arith.constant 0 : i32
    %c0_i32_1 = arith.constant 0 : i32
    return %c0_i32, %c0_i32_0 : i32, i32
  }
  func.func @transform_5(%arg0: i32) -> (i32, i32) {
    %c0_i32 = arith.constant 0 : i32
    %c0_i32_0 = arith.constant 0 : i32
    return %arg0, %c0_i32 : i32, i32
  }
}

</mosaic_0001>

<llo_original>
// kernel: tpu_custom_call.1
$region0: #{tpu_custom_call.1}
  #allocation0 [shape = 'u32[]', space=smem, size = 0x4, offset = 0x4, fixed_abs, tag = 'smem constant byte address 0x4 - core index']
  #allocation1 [shape = 'u32[144,128]{1,0:T(1,128)}', space=vmem, size = 0x12000, scoped, tag = 'internal scratch']
  %s0 = inlined_call_operand.hbm [shape: f32[2,4], index: 0, kind: input, shape index: {}]
  %s1 = inlined_call_operand.hbm [shape: f32[4,10], index: 1, kind: input, shape index: {}]
  %s2 = inlined_call_operand.vmem [shape: f32[1,10], index: 2, kind: input, shape index: {}]
  %s3 = inlined_call_operand.hbm [shape: f32[10,10], index: 3, kind: input, shape index: {}]
  %s4 = inlined_call_operand.vmem [shape: f32[1,10], index: 4, kind: input, shape index: {}]
  %s5 = inlined_call_operand.hbm [shape: f32[2,10], index: 5, kind: output, shape index: {}]
  %s6 = sld [smem:[#allocation0]]
  $region42: #{tpu_custom_call.1} parent=0
    _
  %s8 = ssub.s32 1, %s6
  %s9 = scalar_select 0, %s8, %s6
  $region1: #{tpu_custom_call.1} parent=0
    #allocation2 [shape = 'u8[1024]{0}', space=vmem, size = 0x400, scoped, tag = 'input window, operand 0, single buffered']
    #allocation3 [shape = 's32[1]{0}', space=sflag, size = 0x4, scoped, tag = 'scoped memory for tpu_custom_call.1']
    #allocation4 [shape = 's32[1]{0}', space=sflag, size = 0x4, scoped, tag = 'scoped memory for tpu_custom_call.1']
    #allocation5 [shape = 'u8[2048]{0}', space=vmem, size = 0x800, scoped, tag = 'input window, operand 1, single buffered']
    #allocation6 [shape = 's32[1]{0}', space=sflag, size = 0x4, scoped, tag = 'scoped memory for tpu_custom_call.1']
    #allocation7 [shape = 'u8[8192]{0}', space=vmem, size = 0x2000, scoped, tag = 'input window, operand 3, single buffered']
    #allocation8 [shape = 'u8[1024]{0}', space=vmem, size = 0x400, scoped, tag = 'output window, operand 0, single buffered']
    %10 = vsyncpa [#allocation3], 0
    %11 = vsyncpa [#allocation6], 0
    %12 = vsyncpa [#allocation4], 0
    // Predicated region
    $region2: #{tpu_custom_call.1} parent=1 // pred_check
      _
    $region3: #{tpu_custom_call.1} parent=1 // pred_check_branch
      %14 = sbr.rel (0) target = $region5
    $region4: #{tpu_custom_call.1} parent=1 // pred_region
      %s16 = ssub.s32 32, 32
      %17 = vsyncadd [#allocation3], %s16
      %s19 = sshll.u32 [#allocation2], 4
      %s20 = int_to_ptr.vmem [resolvable:$true] %s19
      %22 = dma.hbm_to_vmem [thread:$0]  %s0, 32, %s20, [#allocation3]
    $region5: #{tpu_custom_call.1} parent=1 // pred_fallthru
      _
    // Predicated region
    $region6: #{tpu_custom_call.1} parent=1 // pred_check
      _
    $region7: #{tpu_custom_call.1} parent=1 // pred_check_branch
      %24 = sbr.rel (0) target = $region9
    $region8: #{tpu_custom_call.1} parent=1 // pred_region
      %s26 = ssub.s32 64, 64
      %27 = vsyncadd [#allocation6], %s26
      %s29 = sshll.u32 [#allocation5], 4
      %s30 = int_to_ptr.vmem [resolvable:$true] %s29
      %32 = dma.hbm_to_vmem [thread:$0]  %s1, 64, %s30, [#allocation6]
    $region9: #{tpu_custom_call.1} parent=1 // pred_fallthru
      _
    // Predicated region
    $region10: #{tpu_custom_call.1} parent=1 // pred_check
      _
    $region11: #{tpu_custom_call.1} parent=1 // pred_check_branch
      %34 = sbr.rel (0) target = $region13
    $region12: #{tpu_custom_call.1} parent=1 // pred_region
      _
    $region13: #{tpu_custom_call.1} parent=1 // pred_fallthru
      _
    // Predicated region
    $region14: #{tpu_custom_call.1} parent=1 // pred_check
      _
    $region15: #{tpu_custom_call.1} parent=1 // pred_check_branch
      %36 = sbr.rel (0) target = $region17
    $region16: #{tpu_custom_call.1} parent=1 // pred_region
      %s38 = ssub.s32 256, 256
      %39 = vsyncadd [#allocation6], %s38
      %s40 = sshll.u32 [#allocation7], 4
      %s41 = int_to_ptr.vmem [resolvable:$true] %s40
      %46 = dma.hbm_to_vmem [thread:$0]  %s3, 256, %s41, [#allocation6], 128, 128, 8
    $region17: #{tpu_custom_call.1} parent=1 // pred_fallthru
      _
    // Predicated region
    $region18: #{tpu_custom_call.1} parent=1 // pred_check
      _
    $region19: #{tpu_custom_call.1} parent=1 // pred_check_branch
      %48 = sbr.rel (0) target = $region21
    $region20: #{tpu_custom_call.1} parent=1 // pred_region
      _
    $region21: #{tpu_custom_call.1} parent=1 // pred_fallthru
      _
    // Predicated region
    $region22: #{tpu_custom_call.1} parent=1 // pred_check
      _
    $region23: #{tpu_custom_call.1} parent=1 // pred_check_branch
      %50 = sbr.rel (0) target = $region25
    $region24: #{tpu_custom_call.1} parent=1 // pred_region
      %51 = dma.done [#allocation3], 32
    $region25: #{tpu_custom_call.1} parent=1 // pred_fallthru
      _
    // Predicated region
    $region26: #{tpu_custom_call.1} parent=1 // pred_check
      _
    $region27: #{tpu_custom_call.1} parent=1 // pred_check_branch
      %53 = sbr.rel (0) target = $region29
    $region28: #{tpu_custom_call.1} parent=1 // pred_region
      %54 = dma.done [#allocation6], 64
    $region29: #{tpu_custom_call.1} parent=1 // pred_fallthru
      _
    // Predicated region
    $region30: #{tpu_custom_call.1} parent=1 // pred_check
      _
    $region31: #{tpu_custom_call.1} parent=1 // pred_check_branch
      %56 = sbr.rel (0) target = $region33
    $region32: #{tpu_custom_call.1} parent=1 // pred_region
      %57 = dma.done [#allocation6], 256
    $region33: #{tpu_custom_call.1} parent=1 // pred_fallthru
      _
    %v58 = vld [vmem:[#allocation2] sm:$0x3]
    %v59 = vld [vmem:[#allocation5] sm:$0xf]
    %v60 = vld [vmem:[%s2] sm:$0x1]
    %v62 = vlaneseq
    %v63 = vshrl.u32 %v62, 7
    %v64 = vsub.s32 0, %v63
    %v65 = vrot.slane %v60, %v64
    %vm67 = vcmask 31744
    %v69 = vsel %vm67, %v58, 0
    %vm71 = vcmask 1043456
    %v73 = vsel %vm71, %v59, 0
    %75 = vmatprep.subr.mxu0 0.0
    %76 = vmatpush1.msra.mxu0 %v73
    %77 = vmatprep.subr.mxu0 0.0
    %78 = vmatpush1.msra.mxu0 0.0
    %79 = vmatprep.subr.mxu0 0.0
    %80 = vmatpush1.msra.mxu0 0.0
    %81 = vmatprep.subr.mxu0 0.0
    %82 = vmatpush1.msra.mxu0 0.0
    %83 = vmatprep.subr.mxu0 0.0
    %84 = vmatpush1.msra.mxu0 0.0
    %85 = vmatprep.subr.mxu0 0.0
    %86 = vmatpush1.msra.mxu0 0.0
    %87 = vmatprep.subr.mxu0 0.0
    %88 = vmatpush1.msra.mxu0 0.0
    %89 = vmatprep.subr.mxu0 0.0
    %90 = vmatpush1.msra.mxu0 0.0
    %91 = vmatprep.subr.mxu0 0.0
    %92 = vmatpush1.msra.mxu0 0.0
    %93 = vmatprep.subr.mxu0 0.0
    %94 = vmatpush1.msra.mxu0 0.0
    %95 = vmatprep.subr.mxu0 0.0
    %96 = vmatpush1.msra.mxu0 0.0
    %97 = vmatprep.subr.mxu0 0.0
    %98 = vmatpush1.msra.mxu0 0.0
    %99 = vmatprep.subr.mxu0 0.0
    %100 = vmatpush1.msra.mxu0 0.0
    %101 = vmatprep.subr.mxu0 0.0
    %102 = vmatpush1.msra.mxu0 0.0
    %103 = vmatprep.subr.mxu0 0.0
    %104 = vmatpush1.msra.mxu0 0.0
    %105 = vmatprep.subr.mxu0 0.0
    %106 = vmatpush1.msra.mxu0 0.0
    %107 = vmatprep.subr.mxu0 0.0
    %108 = vmatpush1.msra.mxu0 0.0
    %109 = vmatprep.subr.mxu0 0.0
    %110 = vmatpush1.msra.mxu0 0.0
    %111 = vmatprep.subr.mxu0 0.0
    %112 = vmatpush1.msra.mxu0 0.0
    %113 = vmatprep.subr.mxu0 0.0
    %114 = vmatpush1.msra.mxu0 0.0
    %115 = vmatprep.subr.mxu0 0.0
    %116 = vmatpush1.msra.mxu0 0.0
    %117 = vmatprep.subr.mxu0 0.0
    %118 = vmatpush1.msra.mxu0 0.0
    %119 = vmatprep.subr.mxu0 0.0
    %120 = vmatpush1.msra.mxu0 0.0
    %121 = vmatprep.subr.mxu0 0.0
    %122 = vmatpush1.msra.mxu0 0.0
    %123 = vmatprep.subr.mxu0 0.0
    %124 = vmatpush1.msra.mxu0 0.0
    %125 = vmatprep.subr.mxu0 0.0
    %126 = vmatpush1.msra.mxu0 0.0
    %127 = vmatprep.subr.mxu0 0.0
    %128 = vmatpush1.msra.mxu0 0.0
    %129 = vmatprep.subr.mxu0 0.0
    %130 = vmatpush1.msra.mxu0 0.0
    %131 = vmatprep.subr.mxu0 0.0
    %132 = vmatpush1.msra.mxu0 0.0
    %133 = vmatprep.subr.mxu0 0.0
    %134 = vmatpush1.msra.mxu0 0.0
    %135 = vmatprep.subr.mxu0 0.0
    %136 = vmatpush1.msra.mxu0 0.0
    %137 = vmatprep.subr.mxu0 0.0
    %138 = vmatpush1.msra.mxu0 0.0
    %139 = vmatprep.mubr.f32.mxu0 0.0
    %140 = vmatmul.mubr.f32.gmra.mrb[0].mxu0 %v69
    %v141 = vpop.f32.mrb[0].mxu0
    %v142 = vadd.f32 %v65, %v141
    %v143 = vpop.f32.mrb[0].mxu0
    %144 = vdwg.mxu0
    %v145 = vmax.f32 %v142, 0.0
    %v146 = vld [vmem:[#allocation7] sm:$0xff]
    %v147 = vld [vmem:[#allocation7 + $0x8] sm:$0x3]
    %v148 = vld [vmem:[%s4] sm:$0x1]
    %v150 = vlaneseq
    %v151 = vshrl.u32 %v150, 7
    %v152 = vsub.s32 0, %v151
    %v153 = vrot.slane %v148, %v152
    %vm155 = vcmask 80896
    %v157 = vsel %vm155, %v145, 0
    %vm159 = vcmask 1041408
    %v161 = vsel %vm159, %v147, 0
    %163 = vmatprep.subr.mxu0 0.0
    %164 = vmatpush1.msra.mxu0 %v146
    %165 = vmatprep.subr.mxu0 0.0
    %166 = vmatpush1.msra.mxu0 %v161
    %167 = vmatprep.subr.mxu0 0.0
    %168 = vmatpush1.msra.mxu0 0.0
    %169 = vmatprep.subr.mxu0 0.0
    %170 = vmatpush1.msra.mxu0 0.0
    %171 = vmatprep.subr.mxu0 0.0
    %172 = vmatpush1.msra.mxu0 0.0
    %173 = vmatprep.subr.mxu0 0.0
    %174 = vmatpush1.msra.mxu0 0.0
    %175 = vmatprep.subr.mxu0 0.0
    %176 = vmatpush1.msra.mxu0 0.0
    %177 = vmatprep.subr.mxu0 0.0
    %178 = vmatpush1.msra.mxu0 0.0
    %179 = vmatprep.subr.mxu0 0.0
    %180 = vmatpush1.msra.mxu0 0.0
    %181 = vmatprep.subr.mxu0 0.0
    %182 = vmatpush1.msra.mxu0 0.0
    %183 = vmatprep.subr.mxu0 0.0
    %184 = vmatpush1.msra.mxu0 0.0
    %185 = vmatprep.subr.mxu0 0.0
    %186 = vmatpush1.msra.mxu0 0.0
    %187 = vmatprep.subr.mxu0 0.0
    %188 = vmatpush1.msra.mxu0 0.0
    %189 = vmatprep.subr.mxu0 0.0
    %190 = vmatpush1.msra.mxu0 0.0
    %191 = vmatprep.subr.mxu0 0.0
    %192 = vmatpush1.msra.mxu0 0.0
    %193 = vmatprep.subr.mxu0 0.0
    %194 = vmatpush1.msra.mxu0 0.0
    %195 = vmatprep.subr.mxu0 0.0
    %196 = vmatpush1.msra.mxu0 0.0
    %197 = vmatprep.subr.mxu0 0.0
    %198 = vmatpush1.msra.mxu0 0.0
    %199 = vmatprep.subr.mxu0 0.0
    %200 = vmatpush1.msra.mxu0 0.0
    %201 = vmatprep.subr.mxu0 0.0
    %202 = vmatpush1.msra.mxu0 0.0
    %203 = vmatprep.subr.mxu0 0.0
    %204 = vmatpush1.msra.mxu0 0.0
    %205 = vmatprep.subr.mxu0 0.0
    %206 = vmatpush1.msra.mxu0 0.0
    %207 = vmatprep.subr.mxu0 0.0
    %208 = vmatpush1.msra.mxu0 0.0
    %209 = vmatprep.subr.mxu0 0.0
    %210 = vmatpush1.msra.mxu0 0.0
    %211 = vmatprep.subr.mxu0 0.0
    %212 = vmatpush1.msra.mxu0 0.0
    %213 = vmatprep.subr.mxu0 0.0
    %214 = vmatpush1.msra.mxu0 0.0
    %215 = vmatprep.subr.mxu0 0.0
    %216 = vmatpush1.msra.mxu0 0.0
    %217 = vmatprep.subr.mxu0 0.0
    %218 = vmatpush1.msra.mxu0 0.0
    %219 = vmatprep.subr.mxu0 0.0
    %220 = vmatpush1.msra.mxu0 0.0
    %221 = vmatprep.subr.mxu0 0.0
    %222 = vmatpush1.msra.mxu0 0.0
    %223 = vmatprep.subr.mxu0 0.0
    %224 = vmatpush1.msra.mxu0 0.0
    %225 = vmatprep.subr.mxu0 0.0
    %226 = vmatpush1.msra.mxu0 0.0
    %227 = vmatprep.mubr.f32.mxu0 0.0
    %228 = vmatmul.mubr.f32.gmra.mrb[0].mxu0 %v157
    %v229 = vpop.f32.mrb[0].mxu0
    %v230 = vadd.f32 %v153, %v229
    %v231 = vpop.f32.mrb[0].mxu0
    %232 = vdwg.mxu0
    %vm233 = vcmask 74752
    %234 = vst.msk [vmem:[#allocation8] sm:$0x3] %vm233, %v230
    // Predicated region
    $region34: #{tpu_custom_call.1} parent=1 // pred_check
      _
    $region35: #{tpu_custom_call.1} parent=1 // pred_check_branch
      %236 = sbr.rel (0) target = $region37
    $region36: #{tpu_custom_call.1} parent=1 // pred_region
      %s238 = ssub.s32 32, 32
      %239 = vsyncadd [#allocation4], %s238
      %s241 = sshll.u32 [#allocation8], 4
      %s242 = int_to_ptr.vmem [resolvable:$true] %s241
      %244 = dma.vmem_to_hbm [thread:$0]  %s242, 32, %s5, [#allocation4]
    $region37: #{tpu_custom_call.1} parent=1 // pred_fallthru
      _
    // Predicated region
    $region38: #{tpu_custom_call.1} parent=1 // pred_check
      _
    $region39: #{tpu_custom_call.1} parent=1 // pred_check_branch
      %246 = sbr.rel (0) target = $region41
    $region40: #{tpu_custom_call.1} parent=1 // pred_region
      %247 = dma.done [#allocation4], 32
    $region41: #{tpu_custom_call.1} parent=1 // pred_fallthru
      _
    %248 = vsyncpa [#allocation3], 1
    %249 = vsyncpa [#allocation6], 1
    %250 = vsyncpa [#allocation4], 1

</llo_original>
